<compile_context>
chip_gen: v6e
topology: v6e:2x2x1
jax: 0.10.0
libtpu: 0.0.40
codegen_flags: <defaults>
</compile_context>

<pallas_src>
import jax
import jax.numpy as jnp
from jax.experimental import pallas as pl
from jax.experimental.pallas import tpu as pltpu


def _make_ffn_kernel(n_layers, use_res, use_ln, eps, compute_dtype):
    def kernel(*refs):
        x_ref = refs[0]
        o_ref = refs[-1]
        param_refs = refs[1:-1]

        xin = x_ref[...].astype(jnp.float32)            # (c_in, tn) lane-dense tile
        h = xin
        idx = 0
        for li in range(n_layers):
            w_ref = param_refs[idx]                     # (c_out_i, c_in_i)
            b_ref = param_refs[idx + 1]                 # (c_out_i, 1)
            idx += 2
            # (c_out_i, c_in_i) @ (c_in_i, tn) -> (c_out_i, tn); f32 accumulation on the MXU.
            h = jnp.dot(w_ref[...], h.astype(compute_dtype),
                        preferred_element_type=jnp.float32) + b_ref[...]
            if li < n_layers - 1:
                h = jnp.tanh(h)                         # EUP transcendental
                # TODO(synk): dropout (self.dropout) omitted; module is used with dropout=None
                # (eval semantics).
        if use_res:
            h = h + xin
        if use_ln:
            g_ref = param_refs[idx]                     # (c_out, 1)
            be_ref = param_refs[idx + 1]                # (c_out, 1)
            # LayerNorm over the channel (sublane) axis; lanes carry independent positions.
            mu = jnp.mean(h, axis=0, keepdims=True)
            var = jnp.mean((h - mu) ** 2, axis=0, keepdims=True)
            h = (h - mu) * jax.lax.rsqrt(var + eps) * g_ref[...] + be_ref[...]
        o_ref[...] = h.astype(o_ref.dtype)

    return kernel


def positionwise_feed_forward(
    x,                 # (B, L, C_in), channels-last (the PyTorch module's transposes are folded away)
    weights,           # list of (C_out_i, C_in_i) conv weights (kernel dim squeezed)
    biases,            # list of (C_out_i,) biases
    *,
    residual=False,
    layer_norm_flag=False,
    gamma=None,
    beta=None,
    reshape=False,
    row_tile=2048,     # positions (lanes) per grid step; snapped to a 128-multiple
    eps=1e-5,
    compute_dtype=jnp.float32,   # set to jnp.bfloat16 for the faster MXU path
):
    B, L, c_in = x.shape
    c_out = weights[-1].shape[0]
    dims_match = (c_in == c_out)
    use_res = residual and dims_match
    use_ln = layer_norm_flag and dims_match

    rows = B * L
    # Lane-dense layout: channels on sublanes, the long B*L axis on lanes.
    xT = x.reshape(rows, c_in).T                         # (c_in, rows)

    # Tile choice: requested tile snapped to a 128 multiple, but never larger than the
    # 128-rounded row count (avoids computing on mostly-padding tiles for tiny inputs).
    r128 = ((rows + 127) // 128) * 128
    tn = max(128, (int(row_tile) // 128) * 128)
    tn = min(tn, r128)
    R = ((rows + tn - 1) // tn) * tn                     # pad rows UP to a multiple of tn
    pad = R - rows
    if pad:
        # Zero columns only (last tile).  They pass harmlessly through tanh / residual /
        # LayerNorm (constant column -> finite output) and are sliced off after the kernel.
        # Do NOT remove the [:, :rows] slice below.
        xT = jnp.pad(xT, ((0, 0), (0, pad)))
    n_steps = R // tn

    # k=1 conv weights used as-is (y = W @ h); biases as column vectors (sublane-aligned).
    wts = [jnp.asarray(w, compute_dtype) for w in weights]
    bs = [jnp.asarray(b, jnp.float32).reshape(-1, 1) for b in biases]

    operands = [xT]
    if n_steps >= 3:
        # Deeper input buffering hides exposed DMA latency on lower-bandwidth parts (v5e).
        x_spec = pl.BlockSpec((c_in, tn), lambda i: (0, i), pipeline_mode=pl.Buffered(3))
    else:
        x_spec = pl.BlockSpec((c_in, tn), lambda i: (0, i))
    in_specs = [x_spec]
    for w, b in zip(wts, bs):
        in_specs.append(pl.BlockSpec(w.shape, lambda i: (0, 0)))   # fetched once, VMEM-resident
        in_specs.append(pl.BlockSpec(b.shape, lambda i: (0, 0)))
        operands += [w, b]
    if use_ln:
        g = jnp.asarray(gamma, jnp.float32).reshape(-1, 1)
        be = jnp.asarray(beta, jnp.float32).reshape(-1, 1)
        in_specs.append(pl.BlockSpec(g.shape, lambda i: (0, 0)))
        in_specs.append(pl.BlockSpec(be.shape, lambda i: (0, 0)))
        operands += [g, be]

    kernel = _make_ffn_kernel(len(weights), use_res, use_ln, eps, compute_dtype)

    outT = pl.pallas_call(
        kernel,
        out_shape=jax.ShapeDtypeStruct((c_out, R), x.dtype),
        grid_spec=pl.GridSpec(
            grid=(n_steps,),
            in_specs=in_specs,
            out_specs=pl.BlockSpec((c_out, tn), lambda i: (0, i)),
        ),
        compiler_params=pltpu.CompilerParams(
            dimension_semantics=("parallel",),          # grid steps independent (megacore-safe)
            vmem_limit_bytes=32 * 1024 * 1024,          # explicit budget; footprint is tiny here
        ),
    )(*operands)

    out = outT[:, :rows].T.reshape(B, L, c_out)
    if reshape:
        # PyTorch: output.view(output.shape[0], -1, 1)
        out = out.reshape(B, -1, 1)
    return out


def _reference(x, weights, biases, residual, layer_norm_flag, gamma, beta, eps=1e-5):
    h = x.astype(jnp.float32)
    n = len(weights)
    for i in range(n):
        h = h @ weights[i].astype(jnp.float32).T + biases[i].astype(jnp.float32)
        if i < n - 1:
            h = jnp.tanh(h)
    if weights[0].shape[1] == weights[-1].shape[0]:
        if residual:
            h = h + x
        if layer_norm_flag:
            mu = jnp.mean(h, axis=-1, keepdims=True)
            var = jnp.mean((h - mu) ** 2, axis=-1, keepdims=True)
            h = (h - mu) * jax.lax.rsqrt(var + eps) * gamma + beta
    return h


def _make_params(key, dims):
    keys = jax.random.split(key, 2 * (len(dims) - 1) + 1)
    weights, biases = [], []
    for i in range(len(dims) - 1):
        bound = 1.0 / (dims[i] ** 0.5)
        w = jax.random.uniform(keys[2 * i], (dims[i + 1], dims[i]),
                               minval=-bound, maxval=bound, dtype=jnp.float32)
        b = jax.random.uniform(keys[2 * i + 1], (dims[i + 1],),
                               minval=-bound, maxval=bound, dtype=jnp.float32)
        weights.append(w)
        biases.append(b)
    return weights, biases, keys[-1]


if __name__ == "__main__":
    key = jax.random.PRNGKey(0)

    # --- Check 1: small module config (dims 4->32->4), residual + LayerNorm, f32 path ---
    dims = [4, 32, 4]
    B, L = 2, 8
    weights, biases, kx = _make_params(key, dims)
    gamma = jnp.ones((dims[-1],), jnp.float32)
    beta = jnp.zeros((dims[-1],), jnp.float32)
    x = jax.random.normal(kx, (B, L, dims[0]), dtype=jnp.float32)

    out = positionwise_feed_forward(
        x, weights, biases, residual=True, layer_norm_flag=True,
        gamma=gamma, beta=beta, reshape=False)
    out = jax.block_until_ready(out)
    ref = _reference(x, weights, biases, True, True, gamma, beta)
    assert out.shape == (B, L, dims[-1])
    assert jnp.max(jnp.abs(out.astype(jnp.float32) - ref)) < 1e-4

    # --- Check 2: multi-tile lane-dense path (grid > 1, Buffered input pipeline), f32 ---
    dims2 = [8, 16, 8]
    B2, L2 = 2, 1024
    weights2, biases2, kx2 = _make_params(jax.random.PRNGKey(1), dims2)
    gamma2 = jnp.ones((dims2[-1],), jnp.float32)
    beta2 = jnp.zeros((dims2[-1],), jnp.float32)
    x2 = jax.random.normal(kx2, (B2, L2, dims2[0]), dtype=jnp.float32)

    out2 = positionwise_feed_forward(
        x2, weights2, biases2, residual=True, layer_norm_flag=True,
        gamma=gamma2, beta=beta2, reshape=False, row_tile=256)
    out2 = jax.block_until_ready(out2)
    ref2 = _reference(x2, weights2, biases2, True, True, gamma2, beta2)
    assert out2.shape == (B2, L2, dims2[-1])
    assert jnp.max(jnp.abs(out2.astype(jnp.float32) - ref2)) < 1e-4

    # --- Check 3: bf16 matmul fast path (looser tolerance vs f32 reference) ---
    out2_bf16 = positionwise_feed_forward(
        x2, weights2, biases2, residual=True, layer_norm_flag=True,
        gamma=gamma2, beta=beta2, reshape=False, row_tile=256,
        compute_dtype=jnp.bfloat16)
    out2_bf16 = jax.block_until_ready(out2_bf16)
    assert jnp.max(jnp.abs(out2_bf16.astype(jnp.float32) - ref2)) < 5e-2

    # --- Check 4: c_in != c_out (residual/LN gated off) + reshape=True path ---
    dims3 = [4, 32, 6]
    weights3, biases3, kx3 = _make_params(jax.random.PRNGKey(2), dims3)
    x3 = jax.random.normal(kx3, (B, L, dims3[0]), dtype=jnp.float32)
    out3 = positionwise_feed_forward(
        x3, weights3, biases3, residual=True, layer_norm_flag=True,
        gamma=None, beta=None, reshape=True)
    out3 = jax.block_until_ready(out3)
    ref3 = _reference(x3, weights3, biases3, True, True, None, None).reshape(B, -1, 1)
    assert out3.shape == (B, L * dims3[-1], 1)
    assert jnp.max(jnp.abs(out3.astype(jnp.float32) - ref3)) < 1e-4

    # --- Check 5: row count not divisible by the tile (pad-up path, single big tile) ---
    dims4 = [4, 32, 4]
    weights4, biases4, kx4 = _make_params(jax.random.PRNGKey(3), dims4)
    gamma4 = jnp.ones((dims4[-1],), jnp.float32)
    beta4 = jnp.zeros((dims4[-1],), jnp.float32)
    B4, L4 = 3, 100                                     # rows = 300 -> padded to 384
    x4 = jax.random.normal(kx4, (B4, L4, dims4[0]), dtype=jnp.float32)
    out4 = positionwise_feed_forward(
        x4, weights4, biases4, residual=True, layer_norm_flag=True,
        gamma=gamma4, beta=beta4, reshape=False)
    out4 = jax.block_until_ready(out4)
    ref4 = _reference(x4, weights4, biases4, True, True, gamma4, beta4)
    assert out4.shape == (B4, L4, dims4[-1])
    assert jnp.max(jnp.abs(out4.astype(jnp.float32) - ref4)) < 1e-4

    print("KERNEL_OK")
</pallas_src>

<mosaic_0001>
module attributes {stable_mosaic.version = 11 : i64} {
  func.func @kernel(%arg0: i32, %arg1: memref<4x128xf32, #tpu.memory_space<vmem>>, %arg2: memref<32x4xf32, #tpu.memory_space<vmem>>, %arg3: memref<32x1xf32, #tpu.memory_space<vmem>>, %arg4: memref<4x32xf32, #tpu.memory_space<vmem>>, %arg5: memref<4x1xf32, #tpu.memory_space<vmem>>, %arg6: memref<4x1xf32, #tpu.memory_space<vmem>>, %arg7: memref<4x1xf32, #tpu.memory_space<vmem>>, %arg8: memref<4x128xf32, #tpu.memory_space<vmem>>) attributes {dimension_semantics = [#tpu.dimension_semantics<parallel>], iteration_bounds = array<i64: 1>, scalar_prefetch = 0 : i64, scratch_operands = 0 : i64, tpu.core_type = #tpu.core_type<tc>, window_params = [{transform_indices = @transform_0, window_bounds = array<i64: 4, 128>}, {pipeline_mode = #tpu.pipeline_mode<synchronous>, transform_indices = @transform_1, window_bounds = array<i64: 32, 4>}, {pipeline_mode = #tpu.pipeline_mode<synchronous>, transform_indices = @transform_2, window_bounds = array<i64: 32, 1>}, {pipeline_mode = #tpu.pipeline_mode<synchronous>, transform_indices = @transform_3, window_bounds = array<i64: 4, 32>}, {pipeline_mode = #tpu.pipeline_mode<synchronous>, transform_indices = @transform_4, window_bounds = array<i64: 4, 1>}, {pipeline_mode = #tpu.pipeline_mode<synchronous>, transform_indices = @transform_5, window_bounds = array<i64: 4, 1>}, {pipeline_mode = #tpu.pipeline_mode<synchronous>, transform_indices = @transform_6, window_bounds = array<i64: 4, 1>}, {transform_indices = @transform_7, window_bounds = array<i64: 4, 128>}]} {
    %c0 = arith.constant 0 : index
    %c0_0 = arith.constant 0 : index
    %0 = vector.load %arg1[%c0, %c0_0] : memref<4x128xf32, #tpu.memory_space<vmem>>, vector<4x128xf32>
    %c0_1 = arith.constant 0 : index
    %c0_2 = arith.constant 0 : index
    %1 = vector.load %arg2[%c0_1, %c0_2] : memref<32x4xf32, #tpu.memory_space<vmem>>, vector<32x4xf32>
    %cst = arith.constant dense<0.000000e+00> : vector<32x128xf32>
    %2 = tpu.matmul %1, %0, %cst {dimension_numbers = #tpu.dot_dimension_numbers<[1], [0], [0], [1], [0, 0, 1, 1], [], []>} : vector<32x4xf32>, vector<4x128xf32>, vector<32x128xf32> -> vector<32x128xf32>
    %c0_3 = arith.constant 0 : index
    %c0_4 = arith.constant 0 : index
    %3 = vector.load %arg3[%c0_3, %c0_4] : memref<32x1xf32, #tpu.memory_space<vmem>>, vector<32x1xf32>
    %4 = vector.broadcast %3 : vector<32x1xf32> to vector<32x128xf32>
    %5 = arith.addf %2, %4 : vector<32x128xf32>
    %6 = math.tanh %5 : vector<32x128xf32>
    %c0_5 = arith.constant 0 : index
    %c0_6 = arith.constant 0 : index
    %7 = vector.load %arg4[%c0_5, %c0_6] : memref<4x32xf32, #tpu.memory_space<vmem>>, vector<4x32xf32>
    %cst_7 = arith.constant dense<0.000000e+00> : vector<4x128xf32>
    %8 = tpu.matmul %7, %6, %cst_7 {dimension_numbers = #tpu.dot_dimension_numbers<[1], [0], [0], [1], [0, 0, 1, 1], [], []>} : vector<4x32xf32>, vector<32x128xf32>, vector<4x128xf32> -> vector<4x128xf32>
    %c0_8 = arith.constant 0 : index
    %c0_9 = arith.constant 0 : index
    %9 = vector.load %arg5[%c0_8, %c0_9] : memref<4x1xf32, #tpu.memory_space<vmem>>, vector<4x1xf32>
    %10 = vector.broadcast %9 : vector<4x1xf32> to vector<4x128xf32>
    %11 = arith.addf %8, %10 : vector<4x128xf32>
    %12 = arith.addf %11, %0 : vector<4x128xf32>
    %cst_10 = arith.constant dense<0.000000e+00> : vector<128xf32>
    %13 = vector.multi_reduction <add>, %12, %cst_10 [0] : vector<4x128xf32> to vector<128xf32>
    %14 = vector.shape_cast %13 : vector<128xf32> to vector<1x128xf32>
    %cst_11 = arith.constant 4.000000e+00 : f32
    %15 = vector.broadcast %cst_11 : f32 to vector<1x128xf32>
    %16 = arith.divf %14, %15 : vector<1x128xf32>
    %17 = vector.broadcast %16 : vector<1x128xf32> to vector<4x128xf32>
    %18 = arith.subf %12, %17 : vector<4x128xf32>
    %19 = arith.mulf %18, %18 : vector<4x128xf32>
    %cst_12 = arith.constant dense<0.000000e+00> : vector<128xf32>
    %20 = vector.multi_reduction <add>, %19, %cst_12 [0] : vector<4x128xf32> to vector<128xf32>
    %21 = vector.shape_cast %20 : vector<128xf32> to vector<1x128xf32>
    %cst_13 = arith.constant 4.000000e+00 : f32
    %22 = vector.broadcast %cst_13 : f32 to vector<1x128xf32>
    %23 = arith.divf %21, %22 : vector<1x128xf32>
    %24 = vector.broadcast %16 : vector<1x128xf32> to vector<4x128xf32>
    %25 = arith.subf %12, %24 : vector<4x128xf32>
    %cst_14 = arith.constant 9.99999974E-6 : f32
    %26 = vector.broadcast %cst_14 : f32 to vector<1x128xf32>
    %27 = arith.addf %23, %26 : vector<1x128xf32>
    %28 = math.rsqrt %27 : vector<1x128xf32>
    %29 = vector.broadcast %28 : vector<1x128xf32> to vector<4x128xf32>
    %30 = arith.mulf %25, %29 : vector<4x128xf32>
    %c0_15 = arith.constant 0 : index
    %c0_16 = arith.constant 0 : index
    %31 = vector.load %arg6[%c0_15, %c0_16] : memref<4x1xf32, #tpu.memory_space<vmem>>, vector<4x1xf32>
    %32 = vector.broadcast %31 : vector<4x1xf32> to vector<4x128xf32>
    %33 = arith.mulf %30, %32 : vector<4x128xf32>
    %c0_17 = arith.constant 0 : index
    %c0_18 = arith.constant 0 : index
    %34 = vector.load %arg7[%c0_17, %c0_18] : memref<4x1xf32, #tpu.memory_space<vmem>>, vector<4x1xf32>
    %35 = vector.broadcast %34 : vector<4x1xf32> to vector<4x128xf32>
    %36 = arith.addf %33, %35 : vector<4x128xf32>
    %c0_19 = arith.constant 0 : index
    %c0_20 = arith.constant 0 : index
    %37 = vector.load %arg8[%c0_19, %c0_20] : memref<4x128xf32, #tpu.memory_space<vmem>>, vector<4x128xf32>
    tpu.vector_store %arg8[%c0_19, %c0_20], %36 {strides = array<i32>} : memref<4x128xf32, #tpu.memory_space<vmem>>, vector<4x128xf32>,
    return
  }
  func.func @transform_0(%arg0: i32) -> (i32, i32) {
    %c0_i32 = arith.constant 0 : i32
    %c0_i32_0 = arith.constant 0 : i32
    return %c0_i32, %arg0 : i32, i32
  }
  func.func @transform_1(%arg0: i32) -> (i32, i32) {
    %c0_i32 = arith.constant 0 : i32
    %c0_i32_0 = arith.constant 0 : i32
    %c0_i32_1 = arith.constant 0 : i32
    return %c0_i32, %c0_i32_0 : i32, i32
  }
  func.func @transform_2(%arg0: i32) -> (i32, i32) {
    %c0_i32 = arith.constant 0 : i32
    %c0_i32_0 = arith.constant 0 : i32
    %c0_i32_1 = arith.constant 0 : i32
    return %c0_i32, %c0_i32_0 : i32, i32
  }
  func.func @transform_3(%arg0: i32) -> (i32, i32) {
    %c0_i32 = arith.constant 0 : i32
    %c0_i32_0 = arith.constant 0 : i32
    %c0_i32_1 = arith.constant 0 : i32
    return %c0_i32, %c0_i32_0 : i32, i32
  }
  func.func @transform_4(%arg0: i32) -> (i32, i32) {
    %c0_i32 = arith.constant 0 : i32
    %c0_i32_0 = arith.constant 0 : i32
    %c0_i32_1 = arith.constant 0 : i32
    return %c0_i32, %c0_i32_0 : i32, i32
  }
  func.func @transform_5(%arg0: i32) -> (i32, i32) {
    %c0_i32 = arith.constant 0 : i32
    %c0_i32_0 = arith.constant 0 : i32
    %c0_i32_1 = arith.constant 0 : i32
    return %c0_i32, %c0_i32_0 : i32, i32
  }
  func.func @transform_6(%arg0: i32) -> (i32, i32) {
    %c0_i32 = arith.constant 0 : i32
    %c0_i32_0 = arith.constant 0 : i32
    %c0_i32_1 = arith.constant 0 : i32
    return %c0_i32, %c0_i32_0 : i32, i32
  }
  func.func @transform_7(%arg0: i32) -> (i32, i32) {
    %c0_i32 = arith.constant 0 : i32
    %c0_i32_0 = arith.constant 0 : i32
    return %c0_i32, %arg0 : i32, i32
  }
}

</mosaic_0001>

<llo_original>
// kernel: tpu_custom_call.1
$region0: #{tpu_custom_call.1}
  #allocation0 [shape = 'u32[]', space=smem, size = 0x4, offset = 0x4, fixed_abs, tag = 'smem constant byte address 0x4 - core index']
  #allocation1 [shape = 'u32[144,128]{1,0:T(1,128)}', space=vmem, size = 0x12000, scoped, tag = 'internal scratch']
  %s0 = inlined_call_operand.vmem [shape: f32[4,128], index: 0, kind: input, shape index: {}]
  %s1 = inlined_call_operand.vmem [shape: f32[32,4], index: 1, kind: input, shape index: {}]
  %s2 = inlined_call_operand.vmem [shape: f32[32,1], index: 2, kind: input, shape index: {}]
  %s3 = inlined_call_operand.vmem [shape: f32[4,32], index: 3, kind: input, shape index: {}]
  %s4 = inlined_call_operand.vmem [shape: f32[4,1], index: 4, kind: input, shape index: {}]
  %s5 = inlined_call_operand.vmem [shape: f32[4,1], index: 5, kind: input, shape index: {}]
  %s6 = inlined_call_operand.vmem [shape: f32[4,1], index: 6, kind: input, shape index: {}]
  %s7 = inlined_call_operand.hbm [shape: f32[4,128], index: 7, kind: output, shape index: {}]
  %s8 = sld [smem:[#allocation0]]
  $region38: #{tpu_custom_call.1} parent=0
    _
  %s10 = ssub.s32 1, %s8
  %s11 = scalar_select 0, %s10, %s8
  $region1: #{tpu_custom_call.1} parent=0
    #allocation2 [shape = 'u8[2048]{0}', space=vmem, size = 0x800, scoped, tag = 'output window, operand 0, single buffered']
    #allocation3 [shape = 's32[1]{0}', space=sflag, size = 0x4, scoped, tag = 'scoped memory for tpu_custom_call.1']
    %12 = vsyncpa [#allocation3], 0
    // Predicated region
    $region2: #{tpu_custom_call.1} parent=1 // pred_check
      _
    $region3: #{tpu_custom_call.1} parent=1 // pred_check_branch
      %14 = sbr.rel (0) target = $region5
    $region4: #{tpu_custom_call.1} parent=1 // pred_region
      _
    $region5: #{tpu_custom_call.1} parent=1 // pred_fallthru
      _
    // Predicated region
    $region6: #{tpu_custom_call.1} parent=1 // pred_check
      _
    $region7: #{tpu_custom_call.1} parent=1 // pred_check_branch
      %16 = sbr.rel (0) target = $region9
    $region8: #{tpu_custom_call.1} parent=1 // pred_region
      _
    $region9: #{tpu_custom_call.1} parent=1 // pred_fallthru
      _
    // Predicated region
    $region10: #{tpu_custom_call.1} parent=1 // pred_check
      _
    $region11: #{tpu_custom_call.1} parent=1 // pred_check_branch
      %18 = sbr.rel (0) target = $region13
    $region12: #{tpu_custom_call.1} parent=1 // pred_region
      _
    $region13: #{tpu_custom_call.1} parent=1 // pred_fallthru
      _
    // Predicated region
    $region14: #{tpu_custom_call.1} parent=1 // pred_check
      _
    $region15: #{tpu_custom_call.1} parent=1 // pred_check_branch
      %20 = sbr.rel (0) target = $region17
    $region16: #{tpu_custom_call.1} parent=1 // pred_region
      _
    $region17: #{tpu_custom_call.1} parent=1 // pred_fallthru
      _
    // Predicated region
    $region18: #{tpu_custom_call.1} parent=1 // pred_check
      _
    $region19: #{tpu_custom_call.1} parent=1 // pred_check_branch
      %22 = sbr.rel (0) target = $region21
    $region20: #{tpu_custom_call.1} parent=1 // pred_region
      _
    $region21: #{tpu_custom_call.1} parent=1 // pred_fallthru
      _
    // Predicated region
    $region22: #{tpu_custom_call.1} parent=1 // pred_check
      _
    $region23: #{tpu_custom_call.1} parent=1 // pred_check_branch
      %24 = sbr.rel (0) target = $region25
    $region24: #{tpu_custom_call.1} parent=1 // pred_region
      _
    $region25: #{tpu_custom_call.1} parent=1 // pred_fallthru
      _
    // Predicated region
    $region26: #{tpu_custom_call.1} parent=1 // pred_check
      _
    $region27: #{tpu_custom_call.1} parent=1 // pred_check_branch
      %26 = sbr.rel (0) target = $region29
    $region28: #{tpu_custom_call.1} parent=1 // pred_region
      _
    $region29: #{tpu_custom_call.1} parent=1 // pred_fallthru
      _
    %v27 = vld [vmem:[%s0] sm:$0xf]
    %v28 = vld [vmem:[%s1] sm:$0xff]
    %v29 = vld [vmem:[%s1 + $0x8] sm:$0xff]
    %v30 = vld [vmem:[%s1 + $0x10] sm:$0xff]
    %v31 = vld [vmem:[%s1 + $0x18] sm:$0xff]
    %v32 = vld [vmem:[%s2] sm:$0xff]
    %v33 = vld [vmem:[%s2 + $0x8] sm:$0xff]
    %v34 = vld [vmem:[%s2 + $0x10] sm:$0xff]
    %v35 = vld [vmem:[%s2 + $0x18] sm:$0xff]
    %37 = vset.pattern.permute.xlu0 0
    %38 = vperm.xlu0 %37, %v32
    %v39 = vpop.permute.xlu0 %38
    %42 = vset.pattern.permute.xlu0 0
    %43 = vperm.xlu0 %42, %v33
    %v44 = vpop.permute.xlu0 %43
    %47 = vset.pattern.permute.xlu0 0
    %48 = vperm.xlu0 %47, %v34
    %v49 = vpop.permute.xlu0 %48
    %52 = vset.pattern.permute.xlu0 0
    %53 = vperm.xlu0 %52, %v35
    %v54 = vpop.permute.xlu0 %53
    %vm56 = vcmask 31744
    %v58 = vsel %vm56, %v28, 0
    %v61 = vsel %vm56, %v29, 0
    %v64 = vsel %vm56, %v30, 0
    %v67 = vsel %vm56, %v31, 0
    %vm69 = vcmask 1043456
    %v71 = vsel %vm69, %v27, 0
    %73 = vmatprep.subr.mxu0 0.0
    %74 = vmatpush1.msra.mxu0 0.0
    %75 = vmatprep.subr.mxu0 0.0
    %76 = vmatpush1.msra.mxu0 0.0
    %77 = vmatprep.subr.mxu0 0.0
    %78 = vmatpush1.msra.mxu0 0.0
    %79 = vmatprep.subr.mxu0 0.0
    %80 = vmatpush1.msra.mxu0 0.0
    %81 = vmatprep.subr.mxu0 0.0
    %82 = vmatpush1.msra.mxu0 0.0
    %83 = vmatprep.subr.mxu0 0.0
    %84 = vmatpush1.msra.mxu0 0.0
    %85 = vmatprep.subr.mxu0 0.0
    %86 = vmatpush1.msra.mxu0 0.0
    %87 = vmatprep.subr.mxu0 0.0
    %88 = vmatpush1.msra.mxu0 0.0
    %89 = vmatprep.subr.mxu0 0.0
    %90 = vmatpush1.msra.mxu0 0.0
    %91 = vmatprep.subr.mxu0 0.0
    %92 = vmatpush1.msra.mxu0 0.0
    %93 = vmatprep.subr.mxu0 0.0
    %94 = vmatpush1.msra.mxu0 0.0
    %95 = vmatprep.subr.mxu0 0.0
    %96 = vmatpush1.msra.mxu0 0.0
    %97 = vmatprep.subr.mxu0 0.0
    %98 = vmatpush1.msra.mxu0 0.0
    %99 = vmatprep.subr.mxu0 0.0
    %100 = vmatpush1.msra.mxu0 0.0
    %101 = vmatprep.subr.mxu0 0.0
    %102 = vmatpush1.msra.mxu0 0.0
    %103 = vmatprep.subr.mxu0 0.0
    %104 = vmatpush1.msra.mxu0 %v71
    %105 = vmatprep.subr.mxu0 0.0
    %106 = vmatpush2.msra.mxu0 0.0
    %107 = vmatprep.subr.mxu0 0.0
    %108 = vmatpush2.msra.mxu0 0.0
    %109 = vmatprep.subr.mxu0 0.0
    %110 = vmatpush2.msra.mxu0 0.0
    %111 = vmatprep.subr.mxu0 0.0
    %112 = vmatpush2.msra.mxu0 0.0
    %113 = vmatprep.subr.mxu0 0.0
    %114 = vmatpush2.msra.mxu0 0.0
    %115 = vmatprep.subr.mxu0 0.0
    %116 = vmatpush2.msra.mxu0 0.0
    %117 = vmatprep.subr.mxu0 0.0
    %118 = vmatpush2.msra.mxu0 0.0
    %119 = vmatprep.subr.mxu0 0.0
    %120 = vmatpush2.msra.mxu0 0.0
    %121 = vmatprep.subr.mxu0 0.0
    %122 = vmatpush2.msra.mxu0 0.0
    %123 = vmatprep.subr.mxu0 0.0
    %124 = vmatpush2.msra.mxu0 0.0
    %125 = vmatprep.subr.mxu0 0.0
    %126 = vmatpush2.msra.mxu0 0.0
    %127 = vmatprep.subr.mxu0 0.0
    %128 = vmatpush2.msra.mxu0 0.0
    %129 = vmatprep.subr.mxu0 0.0
    %130 = vmatpush2.msra.mxu0 0.0
    %131 = vmatprep.subr.mxu0 0.0
    %132 = vmatpush2.msra.mxu0 0.0
    %133 = vmatprep.subr.mxu0 0.0
    %134 = vmatpush2.msra.mxu0 0.0
    %135 = vmatprep.subr.mxu0 0.0
    %136 = vmatpush2.msra.mxu0 0.0
    %137 = vmatprep.mubr.f32.mxu0 0.0
    %138 = vmatmul.mubr.f32.gmra.mxu0 %v58
    %v139 = vpop.f32.mrf.mxu0
    %v140 = vadd.f32 %v39, %v139
    %v141 = vpop.f32.mrf.mxu0
    %142 = vmatprep.mubr.f32.mxu0 0.0
    %143 = vmatmul.mubr.f32.gmra.mxu0 %v61
    %v144 = vpop.f32.mrf.mxu0
    %v145 = vadd.f32 %v44, %v144
    %v146 = vpop.f32.mrf.mxu0
    %147 = vmatprep.mubr.f32.mxu0 0.0
    %148 = vmatmul.mubr.f32.gmra.mxu0 %v64
    %v149 = vpop.f32.mrf.mxu0
    %v150 = vadd.f32 %v49, %v149
    %v151 = vpop.f32.mrf.mxu0
    %152 = vmatprep.mubr.f32.mxu0 0.0
    %153 = vmatmul.mubr.f32.gmra.mxu0 %v67
    %v154 = vpop.f32.mrf.mxu0
    %v155 = vadd.f32 %v54, %v154
    %v156 = vpop.f32.mrf.mxu0
    %157 = vdwg.mxu0
    %v158 = vtanh.pop %v140
    %v159 = vtanh.pop %v145
    %v160 = vtanh.pop %v150
    %v161 = vtanh.pop %v155
    %v162 = vld [vmem:[%s3] sm:$0xf]
    %v163 = vld [vmem:[%s4] sm:$0xf]
    %165 = vset.pattern.permute.xlu0 0
    %166 = vperm.xlu0 %165, %v163
    %v167 = vpop.permute.xlu0 %166
    %vm169 = vcmask 261120
    %v171 = vsel %vm169, %v162, 0
    %173 = vmatprep.subr.mxu0 0.0
    %174 = vmatpush1.msra.mxu0 0.0
    %175 = vmatprep.subr.mxu0 0.0
    %176 = vmatpush1.msra.mxu0 0.0
    %177 = vmatprep.subr.mxu0 0.0
    %178 = vmatpush1.msra.mxu0 0.0
    %179 = vmatprep.subr.mxu0 0.0
    %180 = vmatpush1.msra.mxu0 0.0
    %181 = vmatprep.subr.mxu0 0.0
    %182 = vmatpush1.msra.mxu0 0.0
    %183 = vmatprep.subr.mxu0 0.0
    %184 = vmatpush1.msra.mxu0 0.0
    %185 = vmatprep.subr.mxu0 0.0
    %186 = vmatpush1.msra.mxu0 0.0
    %187 = vmatprep.subr.mxu0 0.0
    %188 = vmatpush1.msra.mxu0 0.0
    %189 = vmatprep.subr.mxu0 0.0
    %190 = vmatpush1.msra.mxu0 0.0
    %191 = vmatprep.subr.mxu0 0.0
    %192 = vmatpush1.msra.mxu0 0.0
    %193 = vmatprep.subr.mxu0 0.0
    %194 = vmatpush1.msra.mxu0 0.0
    %195 = vmatprep.subr.mxu0 0.0
    %196 = vmatpush1.msra.mxu0 0.0
    %197 = vmatprep.subr.mxu0 0.0
    %198 = vmatpush1.msra.mxu0 %v161
    %199 = vmatprep.subr.mxu0 0.0
    %200 = vmatpush1.msra.mxu0 %v160
    %201 = vmatprep.subr.mxu0 0.0
    %202 = vmatpush1.msra.mxu0 %v159
    %203 = vmatprep.subr.mxu0 0.0
    %204 = vmatpush1.msra.mxu0 %v158
    %205 = vmatprep.subr.mxu0 0.0
    %206 = vmatpush2.msra.mxu0 0.0
    %207 = vmatprep.subr.mxu0 0.0
    %208 = vmatpush2.msra.mxu0 0.0
    %209 = vmatprep.subr.mxu0 0.0
    %210 = vmatpush2.msra.mxu0 0.0
    %211 = vmatprep.subr.mxu0 0.0
    %212 = vmatpush2.msra.mxu0 0.0
    %213 = vmatprep.subr.mxu0 0.0
    %214 = vmatpush2.msra.mxu0 0.0
    %215 = vmatprep.subr.mxu0 0.0
    %216 = vmatpush2.msra.mxu0 0.0
    %217 = vmatprep.subr.mxu0 0.0
    %218 = vmatpush2.msra.mxu0 0.0
    %219 = vmatprep.subr.mxu0 0.0
    %220 = vmatpush2.msra.mxu0 0.0
    %221 = vmatprep.subr.mxu0 0.0
    %222 = vmatpush2.msra.mxu0 0.0
    %223 = vmatprep.subr.mxu0 0.0
    %224 = vmatpush2.msra.mxu0 0.0
    %225 = vmatprep.subr.mxu0 0.0
    %226 = vmatpush2.msra.mxu0 0.0
    %227 = vmatprep.subr.mxu0 0.0
    %228 = vmatpush2.msra.mxu0 0.0
    %229 = vmatprep.subr.mxu0 0.0
    %230 = vmatpush2.msra.mxu0 0.0
    %231 = vmatprep.subr.mxu0 0.0
    %232 = vmatpush2.msra.mxu0 0.0
    %233 = vmatprep.subr.mxu0 0.0
    %234 = vmatpush2.msra.mxu0 0.0
    %235 = vmatprep.subr.mxu0 0.0
    %236 = vmatpush2.msra.mxu0 0.0
    %237 = vmatprep.mubr.f32.mxu0 0.0
    %238 = vmatmul.mubr.f32.gmra.mxu0 %v171
    %v239 = vpop.f32.mrf.mxu0
    %v240 = vadd.f32 %v167, %v239
    %v241 = vpop.f32.mrf.mxu0
    %242 = vdwg.mxu0
    %v243 = vadd.f32 %v240, %v27
    %v244 = vsel %vm69, %v243, 0.0
    %v245 = vrot.slane %v244, 4
    %v246 = vadd.f32 %v244, %v245
    %v247 = vrot.slane %v246, 2
    %v248 = vadd.f32 %v246, %v247
    %v249 = vrot.slane %v248, 1
    %v250 = vadd.f32 %v248, %v249
    %v251 = vrcp.pop 4.0
    %v252 = vmul.f32 %v250, %v251
    %v253 = vsub.f32 %v243, %v252
    %v254 = vmul.f32 %v253, %v253
    %v255 = vsel %vm69, %v254, 0.0
    %v256 = vrot.slane %v255, 4
    %v257 = vadd.f32 %v255, %v256
    %v258 = vrot.slane %v257, 2
    %v259 = vadd.f32 %v257, %v258
    %v260 = vrot.slane %v259, 1
    %v261 = vadd.f32 %v259, %v260
    %v262 = vmul.f32 %v261, %v251
    %v263 = vadd.f32 %v262, 1e-05
    %v264 = vrsqrt.pop %v263
    %v265 = vmul.f32 %v253, %v264
    %v266 = vld [vmem:[%s5] sm:$0xf]
    %268 = vset.pattern.permute.xlu0 0
    %269 = vperm.xlu0 %268, %v266
    %v270 = vpop.permute.xlu0 %269
    %v272 = vmul.f32 %v265, %v270
    %v273 = vld [vmem:[%s6] sm:$0xf]
    %275 = vset.pattern.permute.xlu0 0
    %276 = vperm.xlu0 %275, %v273
    %v277 = vpop.permute.xlu0 %276
    %v279 = vadd.f32 %v272, %v277
    %280 = vst [vmem:[#allocation2] sm:$0xf] %v279
    // Predicated region
    $region30: #{tpu_custom_call.1} parent=1 // pred_check
      _
    $region31: #{tpu_custom_call.1} parent=1 // pred_check_branch
      %282 = sbr.rel (0) target = $region33
    $region32: #{tpu_custom_call.1} parent=1 // pred_region
      %s284 = ssub.s32 64, 64
      %285 = vsyncadd [#allocation3], %s284
      %s287 = sshll.u32 [#allocation2], 4
      %s288 = int_to_ptr.vmem [resolvable:$true] %s287
      %290 = dma.vmem_to_hbm [thread:$0]  %s288, 64, %s7, [#allocation3]
    $region33: #{tpu_custom_call.1} parent=1 // pred_fallthru
      _
    // Predicated region
    $region34: #{tpu_custom_call.1} parent=1 // pred_check
      _
    $region35: #{tpu_custom_call.1} parent=1 // pred_check_branch
      %292 = sbr.rel (0) target = $region37
    $region36: #{tpu_custom_call.1} parent=1 // pred_region
      %293 = dma.done [#allocation3], 64
    $region37: #{tpu_custom_call.1} parent=1 // pred_fallthru
      _
    %294 = vsyncpa [#allocation3], 1

</llo_original>
